<compile_context>
chip_gen: v5e
topology: v5e:2x2
jax: 0.10.0
libtpu: 0.0.40
codegen_flags: <defaults>
</compile_context>

<pallas_src>
import functools

import jax
import jax.numpy as jnp
from jax.experimental import pallas as pl
from jax.experimental.pallas import tpu as pltpu

KH, KW = 3, 3
COUT_PAD = 128  # lane-dense padded output-channel count (real Cout = 96)


def _conv_stats_kernel(p_ref, w_ref, o_ref, stats_ref):
    # p_ref:     [TM, K]          bf16 im2col patch tile (K = 9*Cin)
    # w_ref:     [K, COUT_PAD]    bf16 weight (same block every step -> resident)
    # o_ref:     [TM, COUT_PAD]   f32 conv output tile
    # stats_ref: [2, COUT_PAD]    per-tile partial (sum, sum of squares)
    x = jnp.maximum(p_ref[...], 0)  # fused ReLU (bf16)
    acc = jnp.dot(x, w_ref[...], preferred_element_type=jnp.float32)
    o_ref[...] = acc
    s = jnp.sum(acc, axis=0, keepdims=True)          # [1, COUT_PAD]
    sq = jnp.sum(acc * acc, axis=0, keepdims=True)   # [1, COUT_PAD]
    stats_ref[...] = jnp.concatenate([s, sq], axis=0)


def _bn_apply_kernel(stats_ref, gamma_ref, beta_ref, y_ref, o_ref, *, count, eps):
    # stats_ref: [2, COUT_PAD] total (sum, sumsq); gamma/beta: [1, COUT_PAD]
    # y_ref/o_ref: [TM, COUT_PAD]
    st = stats_ref[...]
    inv_n = 1.0 / count
    mean = st[0:1, :] * inv_n
    var = st[1:2, :] * inv_n - mean * mean
    inv_std = jax.lax.rsqrt(var + eps)
    scale = gamma_ref[...] * inv_std              # [1, COUT_PAD]
    shift = beta_ref[...] - mean * scale          # [1, COUT_PAD]
    o_ref[...] = y_ref[...] * scale + shift       # single FMA per element


def relu_conv_bn(x_nchw, w_oihw, gamma, beta, eps=1e-3, row_tile=256):
    """x_nchw: [N, Cin, H, W] f32. Returns [N, Cout, H, W] f32."""
    N, Cin, H, W = x_nchw.shape
    Cout, Cin_w, kh, kw = w_oihw.shape
    assert Cin_w == Cin and (kh, kw) == (KH, KW) and Cout <= COUT_PAD

    K = KH * KW * Cin
    rows = N * H * W
    num_tiles = pl.cdiv(rows, row_tile)
    m_pad = num_tiles * row_tile

    # ---- layout glue (plain JAX): NCHW->NHWC, zero-pad, im2col, bf16 cast ----
    x_nhwc = jnp.transpose(x_nchw, (0, 2, 3, 1)).astype(jnp.float32)
    x_pad = jnp.pad(x_nhwc, ((0, 0), (1, 1), (1, 1), (0, 0)))
    taps = [x_pad[:, i:i + H, j:j + W, :] for i in range(KH) for j in range(KW)]
    patches = jnp.stack(taps, axis=3).reshape(rows, K)            # [(n h w), (kh kw cin)]
    patches = jnp.pad(patches, ((0, m_pad - rows), (0, 0)))       # zero rows -> 0 conv out
    patches = patches.astype(jnp.bfloat16)

    w_km = jnp.transpose(w_oihw, (2, 3, 1, 0)).reshape(K, Cout)   # [(kh kw cin), cout]
    w_km = jnp.pad(w_km, ((0, 0), (0, COUT_PAD - Cout))).astype(jnp.bfloat16)
    gamma_p = jnp.pad(gamma.astype(jnp.float32), (0, COUT_PAD - Cout)).reshape(1, COUT_PAD)
    beta_p = jnp.pad(beta.astype(jnp.float32), (0, COUT_PAD - Cout)).reshape(1, COUT_PAD)

    cparams = pltpu.CompilerParams(
        dimension_semantics=("parallel",),
        vmem_limit_bytes=32 * 1024 * 1024,
    )

    # ---- pass 1: fused ReLU + conv (one K=288 bf16 matmul / tile) + partial stats ----
    conv_out, partial_stats = pl.pallas_call(
        _conv_stats_kernel,
        grid=(num_tiles,),
        in_specs=[
            pl.BlockSpec((row_tile, K), lambda i: (i, 0)),
            pl.BlockSpec((K, COUT_PAD), lambda i: (0, 0)),
        ],
        out_specs=[
            pl.BlockSpec((row_tile, COUT_PAD), lambda i: (i, 0)),
            pl.BlockSpec((None, 2, COUT_PAD), lambda i: (i, 0, 0)),
        ],
        out_shape=[
            jax.ShapeDtypeStruct((m_pad, COUT_PAD), jnp.float32),
            jax.ShapeDtypeStruct((num_tiles, 2, COUT_PAD), jnp.float32),
        ],
        compiler_params=cparams,
    )(patches, w_km)

    # Tiny cross-tile reduction of (sum, sumsq): [num_tiles, 2, 128] -> [2, 128].
    # Padded rows contributed exactly zero, so these are the true batch sums.
    stats = jnp.sum(partial_stats, axis=0)

    # ---- pass 2: BN apply, y = conv * scale + shift ----
    out_rows = pl.pallas_call(
        functools.partial(_bn_apply_kernel, count=float(rows), eps=float(eps)),
        grid=(num_tiles,),
        in_specs=[
            pl.BlockSpec((2, COUT_PAD), lambda i: (0, 0)),
            pl.BlockSpec((1, COUT_PAD), lambda i: (0, 0)),
            pl.BlockSpec((1, COUT_PAD), lambda i: (0, 0)),
            pl.BlockSpec((row_tile, COUT_PAD), lambda i: (i, 0)),
        ],
        out_specs=pl.BlockSpec((row_tile, COUT_PAD), lambda i: (i, 0)),
        out_shape=jax.ShapeDtypeStruct((m_pad, COUT_PAD), jnp.float32),
        compiler_params=cparams,
    )(stats, gamma_p, beta_p, conv_out)

    out = out_rows[:rows, :Cout].reshape(N, H, W, Cout)
    return jnp.transpose(out, (0, 3, 1, 2))  # back to NCHW


if __name__ == "__main__":
    key = jax.random.PRNGKey(0)
    k_x, k_w = jax.random.split(key)

    # Small shapes consistent with the module (Cin=32, Cout=96 fixed by the conv).
    N, Cin, H, W = 2, 32, 16, 16
    Cout = 96

    x = jax.random.normal(k_x, (N, Cin, H, W), dtype=jnp.float32)
    w = jax.random.normal(k_w, (Cout, Cin, 3, 3), dtype=jnp.float32) * (1.0 / (Cin * 9) ** 0.5)
    gamma = jnp.ones((Cout,), dtype=jnp.float32)
    beta = jnp.zeros((Cout,), dtype=jnp.float32)

    out = relu_conv_bn(x, w, gamma, beta, eps=1e-3)
    out = jax.block_until_ready(out)

    assert out.shape == (N, Cout, H, W), out.shape
    assert out.dtype == jnp.float32

    # Reference (same bf16-rounded inputs, f32 accumulation) with loose tolerance.
    def ref(x, w, gamma, beta, eps):
        xb = jnp.maximum(x, 0.0).astype(jnp.bfloat16).astype(jnp.float32)
        wb = w.astype(jnp.bfloat16).astype(jnp.float32)
        y = jax.lax.conv_general_dilated(
            xb, wb, window_strides=(1, 1), padding=((1, 1), (1, 1)),
            dimension_numbers=("NCHW", "OIHW", "NCHW"))
        mean = jnp.mean(y, axis=(0, 2, 3), keepdims=True)
        var = jnp.mean((y - mean) ** 2, axis=(0, 2, 3), keepdims=True)
        return ((y - mean) * jax.lax.rsqrt(var + eps) * gamma.reshape(1, -1, 1, 1)
                + beta.reshape(1, -1, 1, 1))

    expected = ref(x, w, gamma, beta, 1e-3)
    max_err = float(jnp.max(jnp.abs(out - expected)))
    assert jnp.allclose(out, expected, atol=3e-2, rtol=3e-2), max_err

    print("KERNEL_OK")
</pallas_src>

<mosaic_0001>
module attributes {stable_mosaic.version = 11 : i64} {
  func.func @_conv_stats_kernel(%arg0: i32, %arg1: memref<256x288xbf16, #tpu.memory_space<vmem>>, %arg2: memref<288x128xbf16, #tpu.memory_space<vmem>>, %arg3: memref<256x128xf32, #tpu.memory_space<vmem>>, %arg4: memref<1x2x128xf32, #tpu.memory_space<vmem>>) attributes {dimension_semantics = [#tpu.dimension_semantics<parallel>], iteration_bounds = array<i64: 2>, scalar_prefetch = 0 : i64, scratch_operands = 0 : i64, tpu.core_type = #tpu.core_type<tc>, window_params = [{transform_indices = @transform_0, window_bounds = array<i64: 256, 288>}, {pipeline_mode = #tpu.pipeline_mode<synchronous>, transform_indices = @transform_1, window_bounds = array<i64: 288, 128>}, {transform_indices = @transform_2, window_bounds = array<i64: 256, 128>}, {transform_indices = @transform_3, window_bounds = array<i64: 1, 2, 128>}]} {
    %c0 = arith.constant 0 : index
    %c0_0 = arith.constant 0 : index
    %0 = vector.load %arg1[%c0, %c0_0] : memref<256x288xbf16, #tpu.memory_space<vmem>>, vector<256x288xbf16>
    %cst = arith.constant 0.000000e+00 : bf16
    %1 = vector.broadcast %cst : bf16 to vector<256x288xbf16>
    %2 = arith.maximumf %0, %1 : vector<256x288xbf16>
    %c0_1 = arith.constant 0 : index
    %c0_2 = arith.constant 0 : index
    %3 = vector.load %arg2[%c0_1, %c0_2] : memref<288x128xbf16, #tpu.memory_space<vmem>>, vector<288x128xbf16>
    %cst_3 = arith.constant dense<0.000000e+00> : vector<256x128xf32>
    %4 = tpu.matmul %2, %3, %cst_3 {dimension_numbers = #tpu.dot_dimension_numbers<[1], [0], [0], [1], [0, 0, 1, 1], [], []>} : vector<256x288xbf16>, vector<288x128xbf16>, vector<256x128xf32> -> vector<256x128xf32>
    %c0_4 = arith.constant 0 : index
    %c0_5 = arith.constant 0 : index
    %5 = vector.load %arg3[%c0_4, %c0_5] : memref<256x128xf32, #tpu.memory_space<vmem>>, vector<256x128xf32>
    tpu.vector_store %arg3[%c0_4, %c0_5], %4 {strides = array<i32>} : memref<256x128xf32, #tpu.memory_space<vmem>>, vector<256x128xf32>,
    %cst_6 = arith.constant dense<0.000000e+00> : vector<128xf32>
    %6 = vector.multi_reduction <add>, %4, %cst_6 [0] : vector<256x128xf32> to vector<128xf32>
    %7 = vector.shape_cast %6 : vector<128xf32> to vector<1x128xf32>
    %8 = arith.mulf %4, %4 : vector<256x128xf32>
    %cst_7 = arith.constant dense<0.000000e+00> : vector<128xf32>
    %9 = vector.multi_reduction <add>, %8, %cst_7 [0] : vector<256x128xf32> to vector<128xf32>
    %10 = vector.shape_cast %9 : vector<128xf32> to vector<1x128xf32>
    %11 = tpu.concatenate %7, %10 in 0 : vector<1x128xf32>, vector<1x128xf32> -> vector<2x128xf32>
    %c0_8 = arith.constant 0 : index
    %c0_9 = arith.constant 0 : index
    %c0_10 = arith.constant 0 : index
    %12 = vector.load %arg4[%c0_8, %c0_9, %c0_10] : memref<1x2x128xf32, #tpu.memory_space<vmem>>, vector<1x2x128xf32>
    %13 = vector.shape_cast %12 : vector<1x2x128xf32> to vector<2x128xf32>
    %14 = vector.shape_cast %11 : vector<2x128xf32> to vector<1x2x128xf32>
    tpu.vector_store %arg4[%c0_8, %c0_9, %c0_10], %14 {strides = array<i32>} : memref<1x2x128xf32, #tpu.memory_space<vmem>>, vector<1x2x128xf32>,
    return
  }
  func.func @transform_0(%arg0: i32) -> (i32, i32) {
    %c0_i32 = arith.constant 0 : i32
    %c0_i32_0 = arith.constant 0 : i32
    return %arg0, %c0_i32 : i32, i32
  }
  func.func @transform_1(%arg0: i32) -> (i32, i32) {
    %c0_i32 = arith.constant 0 : i32
    %c0_i32_0 = arith.constant 0 : i32
    %c0_i32_1 = arith.constant 0 : i32
    return %c0_i32, %c0_i32_0 : i32, i32
  }
  func.func @transform_2(%arg0: i32) -> (i32, i32) {
    %c0_i32 = arith.constant 0 : i32
    %c0_i32_0 = arith.constant 0 : i32
    return %arg0, %c0_i32 : i32, i32
  }
  func.func @transform_3(%arg0: i32) -> (i32, i32, i32) {
    %c0_i32 = arith.constant 0 : i32
    %c0_i32_0 = arith.constant 0 : i32
    %c0_i32_1 = arith.constant 0 : i32
    return %arg0, %c0_i32, %c0_i32_0 : i32, i32, i32
  }
}

</mosaic_0001>

<llo_original>
// kernel: tpu_custom_call.1
$region0: #{tpu_custom_call.1}
  #allocation0 [shape = 'u32[]', space=smem, size = 0x4, offset = 0x4, fixed_abs, tag = 'smem constant byte address 0x4 - core index']
  #allocation1 [shape = 'u32[72,128]{1,0:T(1,128)}', space=vmem, size = 0x9000, scoped, tag = 'internal scratch']
  %s0 = inlined_call_operand.vmem [shape: bf16[512,288], index: 0, kind: input, shape index: {}]
  %s1 = inlined_call_operand.vmem [shape: bf16[288,128], index: 1, kind: input, shape index: {}]
  %s2 = inlined_call_operand.hbm [shape: f32[512,128], index: 2, kind: output, shape index: {0}]
  %s3 = inlined_call_operand.hbm [shape: f32[2,2,128], index: 3, kind: output, shape index: {1}]
  %4 = xla_tuple %s2, %s3
  %s5 = sld [smem:[#allocation0]]
  $region49: #{tpu_custom_call.1} parent=0
    _
  %s7 = ssub.s32 1, %s5
  %s8 = scalar_select 0, %s7, %s5
  $region1: #{tpu_custom_call.1} parent=0
    #allocation2 [shape = 'u8[262144]{0}', space=vmem, size = 0x40000, scoped, tag = 'output window, operand 0']
    #allocation3 [shape = 's32[2]{0}', space=sflag, size = 0x8, scoped, tag = 'scoped memory for tpu_custom_call.1']
    #allocation4 [shape = 'u8[2048]{0}', space=vmem, size = 0x800, scoped, tag = 'output window, operand 1']
    #allocation5 [shape = 's32[2]{0}', space=sflag, size = 0x8, scoped, tag = 'scoped memory for tpu_custom_call.1']
    %9 = vsyncpa [#allocation3], 0
    %s10 = scalar_lea.sflag [#allocation3], 1
    %11 = vsyncpa %s10, 0
    %12 = vsyncpa [#allocation5], 0
    %s13 = scalar_lea.sflag [#allocation5], 1
    %14 = vsyncpa %s13, 0
    loop: start=0, step=1, limit=4
    $region2: #{tpu_custom_call.1} parent=1 // loop_pre_header
      _
    $region3: #{tpu_custom_call.1} parent=1 // loop_header
      %s16 = sphi 0, %s20
      %p17 = scmp.ge.s32.totalorder %s16, 4
      %s26 = sphi 0, %s28
      %s29 = sphi 0, %s26
      %s30 = sphi 0, %s29
      %s46 = sphi 0, %s30
      %s50 = sphi 0, %s50
      %s52 = sphi 0, %s50
      %s53 = sphi 0, %s52
      %s67 = sphi 0, %s53
      %s73 = sphi 0, %s75
      %s76 = sphi 0, %s73
      %s77 = sphi 0, %s76
      %s93 = sphi 0, %s77
      %s99 = sphi 0, %s101
      %s102 = sphi 0, %s99
      %s103 = sphi 0, %s102
      %s119 = sphi 0, %s103
    $region4: #{tpu_custom_call.1} parent=1 // loop_header_branch
      %19 = sbr.rel (%p17) target = $region8
    $region5: #{tpu_custom_call.1} parent=1 // loop_body
      %s21 = ssub.s32 %s16, 1
      %s22 = ssub.s32 %s16, 2
      %s23 = sadd.s32 %s16, 1
      %s24 = ssub.s32 %s16, %s23
      %p25 = scmp.eq.s32.totalorder %s24, 0
      %s27 = sadd.s32 %s26, 1
      %s28 = scalar_select %p25, %s26, %s27
      %p31 = pneg %p25
      %p32 = scmp.eq.s32.totalorder %s16, 1
      %p33 = por %p31, %p32
      %p34 = scmp.ne.s32.totalorder %s26, %s29
      %p35 = scmp.eq.s32.totalorder %s16, 0
      %p36 = por %p34, %p35
      %p37 = scmp.ne.s32.totalorder %s26, %s29
      %p38 = scmp.eq.s32.totalorder %s21, 1
      %p39 = por %p37, %p38
      %p40 = scmp.ne.s32.totalorder %s29, %s30
      %p41 = scmp.eq.s32.totalorder %s21, 0
      %p42 = por %p40, %p41
      %p43 = scmp.ne.s32.totalorder %s29, %s30
      %p44 = scmp.eq.s32.totalorder %s22, 1
      %p45 = por %p43, %p44
      %p47 = scmp.ne.s32.totalorder %s30, %s46
      %p48 = scmp.eq.s32.totalorder %s22, 0
      %p49 = por %p47, %p48
      %s51 = sadd.s32 %s50, 1
      %p54 = scmp.eq.s32.totalorder %s16, 1
      %p55 = scmp.ne.s32.totalorder %s50, %s52
      %p56 = scmp.eq.s32.totalorder %s16, 0
      %p57 = por %p55, %p56
      %p58 = scmp.ne.s32.totalorder %s50, %s52
      %p59 = scmp.eq.s32.totalorder %s21, 1
      %p60 = por %p58, %p59
      %p61 = scmp.ne.s32.totalorder %s52, %s53
      %p62 = scmp.eq.s32.totalorder %s21, 0
      %p63 = por %p61, %p62
      %p64 = scmp.ne.s32.totalorder %s52, %s53
      %p65 = scmp.eq.s32.totalorder %s22, 1
      %p66 = por %p64, %p65
      %p68 = scmp.ne.s32.totalorder %s53, %s67
      %p69 = scmp.eq.s32.totalorder %s22, 0
      %p70 = por %p68, %p69
      %s71 = ssub.s32 %s16, %s23
      %p72 = scmp.eq.s32.totalorder %s71, 0
      %s74 = sadd.s32 %s73, 1
      %s75 = scalar_select %p72, %s73, %s74
      %p78 = pneg %p72
      %p79 = scmp.eq.s32.totalorder %s16, 1
      %p80 = por %p78, %p79
      %p81 = scmp.ne.s32.totalorder %s73, %s76
      %p82 = scmp.eq.s32.totalorder %s16, 0
      %p83 = por %p81, %p82
      %p84 = scmp.ne.s32.totalorder %s73, %s76
      %p85 = scmp.eq.s32.totalorder %s21, 1
      %p86 = por %p84, %p85
      %p87 = scmp.ne.s32.totalorder %s76, %s77
      %p88 = scmp.eq.s32.totalorder %s21, 0
      %p89 = por %p87, %p88
      %p90 = scmp.ne.s32.totalorder %s76, %s77
      %p91 = scmp.eq.s32.totalorder %s22, 1
      %p92 = por %p90, %p91
      %p94 = scmp.ne.s32.totalorder %s77, %s93
      %p95 = scmp.eq.s32.totalorder %s22, 0
      %p96 = por %p94, %p95
      %s97 = ssub.s32 %s16, %s23
      %p98 = scmp.eq.s32.totalorder %s97, 0
      %s100 = sadd.s32 %s99, 1
      %s101 = scalar_select %p98, %s99, %s100
      %p104 = pneg %p98
      %p105 = scmp.eq.s32.totalorder %s16, 1
      %p106 = por %p104, %p105
      %p107 = scmp.ne.s32.totalorder %s99, %s102
      %p108 = scmp.eq.s32.totalorder %s16, 0
      %p109 = por %p107, %p108
      %p110 = scmp.ne.s32.totalorder %s99, %s102
      %p111 = scmp.eq.s32.totalorder %s21, 1
      %p112 = por %p110, %p111
      %p113 = scmp.ne.s32.totalorder %s102, %s103
      %p114 = scmp.eq.s32.totalorder %s21, 0
      %p115 = por %p113, %p114
      %p116 = scmp.ne.s32.totalorder %s102, %s103
      %p117 = scmp.eq.s32.totalorder %s22, 1
      %p118 = por %p116, %p117
      %p120 = scmp.ne.s32.totalorder %s103, %s119
      %p121 = scmp.eq.s32.totalorder %s22, 0
      %p122 = por %p120, %p121
      %p123 = scmp.le.s32.totalorder 1, %s16
      %p124 = scmp.lt.s32.totalorder %s16, 3
      %p125 = pnand %p123, %p124
      %p126 = pneg %p125
      // Predicated region
      $region9: #{tpu_custom_call.1} parent=5 // pred_check
        _
      $region10: #{tpu_custom_call.1} parent=5 // pred_check_branch
        %128 = sbr.rel (%p125) target = $region12
      $region11: #{tpu_custom_call.1} parent=5 // pred_region
        %s129 = ssub.s32 %s16, 1
        // Predicated region
        $region13: #{tpu_custom_call.1} parent=11 // pred_check
          %p130 = pneg %p63
        $region14: #{tpu_custom_call.1} parent=11 // pred_check_branch
          %132 = sbr.rel (%p130) target = $region16
        $region15: #{tpu_custom_call.1} parent=11 // pred_region
          _
        $region16: #{tpu_custom_call.1} parent=11 // pred_fallthru
          _
      $region12: #{tpu_custom_call.1} parent=5 // pred_fallthru
        _
      %p133 = scmp.lt.s32.totalorder %s16, 2
      // Predicated region
      $region17: #{tpu_custom_call.1} parent=5 // pred_check
        %p134 = pneg %p133
      $region18: #{tpu_custom_call.1} parent=5 // pred_check_branch
        %136 = sbr.rel (%p134) target = $region20
      $region19: #{tpu_custom_call.1} parent=5 // pred_region
        // Predicated region
        $region21: #{tpu_custom_call.1} parent=19 // pred_check
          %p137 = pneg %p36
        $region22: #{tpu_custom_call.1} parent=19 // pred_check_branch
          %139 = sbr.rel (%p137) target = $region24
        $region23: #{tpu_custom_call.1} parent=19 // pred_region
          %s140 = smul.u32 32, %s16
          %p141 = scmp.lt.s32.totalorder %s140, 63
          %s142 = scalar_select %p141, %s140, 63
          %s143 = smul.addr %s142, 3
          %s144 = smul.addr %s143, 4
          %s145 = scalar_lea.vmem %s0, %s144
          %s146 = smul.u32 32, %s16
        $region24: #{tpu_custom_call.1} parent=19 // pred_fallthru
          _
      $region20: #{tpu_custom_call.1} parent=5 // pred_fallthru
        _
      %p147 = scmp.le.s32.totalorder 1, %s16
      %p148 = scmp.lt.s32.totalorder %s16, 3
      %p149 = pnand %p147, %p148
      %p150 = pneg %p149
      // Predicated region
      $region25: #{tpu_custom_call.1} parent=5 // pred_check
        _
      $region26: #{tpu_custom_call.1} parent=5 // pred_check_branch
        %152 = sbr.rel (%p149) target = $region28
      $region27: #{tpu_custom_call.1} parent=5 // pred_region
        %s153 = ssub.s32 %s16, 1
        %s154 = smul.u32 32, %s21
        %p155 = scmp.lt.s32.totalorder %s154, 63
        %s156 = scalar_select %p155, %s154, 63
        %s157 = smul.addr %s156, 3
        %s158 = smul.addr %s157, 4
        %s159 = scalar_lea.vmem %s0, %s158
        %p160 = pneg %p42
        %p161 = pneg %p39
        %p162 = pneg %p63
        %p163 = pneg %p60
        %p164 = pneg %p89
        %p165 = pneg %p86
        %s166 = sand.u32 %s76, 1
        %s167 = scalar_lea.sflag [#allocation3], %s166
        %s168 = sand.u32 %s76, 1
        %s169 = smul.addr %s168, 256
        %s170 = scalar_lea.vmem [#allocation2], %s169
        %p171 = pneg %p115
        %p172 = pneg %p112
        %s173 = sand.u32 %s102, 1
        %s174 = scalar_lea.sflag [#allocation5], %s173
        %s175 = sand.u32 %s102, 1
        %s176 = smul.addr %s175, 2
        %s177 = scalar_lea.vmem [#allocation4], %s176
        %s178 = smul.u32 32, %s21
        %p179 = scmp.lt.s32.totalorder %s178, 63
        %s180 = scalar_select %p179, %s178, 63
        %s181 = smul.addr %s180, 3
        %s182 = smul.addr %s181, 4
        %s183 = scalar_lea.vmem %s0, %s182
        %s184 = smul.u32 32, %s21
        %s185 = smul.u32 32, %s21
        %v187 = vld [vmem:[%s183] sm:$0xff]
        %v188 = vld [vmem:[%s183 + $0x8] sm:$0xf]
        %v189 = vld [vmem:[%s183 + $0xc] sm:$0xff]
        %v190 = vld [vmem:[%s183 + $0x14] sm:$0xf]
        %v191 = vld [vmem:[%s183 + $0x18] sm:$0xff]
        %v192 = vld [vmem:[%s183 + $0x20] sm:$0xf]
        %v193 = vld [vmem:[%s183 + $0x24] sm:$0xff]
        %v194 = vld [vmem:[%s183 + $0x2c] sm:$0xf]
        %v195 = vld [vmem:[%s183 + $0x30] sm:$0xff]
        %v196 = vld [vmem:[%s183 + $0x38] sm:$0xf]
        %v197 = vld [vmem:[%s183 + $0x3c] sm:$0xff]
        %v198 = vld [vmem:[%s183 + $0x44] sm:$0xf]
        %v199 = vld [vmem:[%s183 + $0x48] sm:$0xff]
        %v200 = vld [vmem:[%s183 + $0x50] sm:$0xf]
        %v201 = vld [vmem:[%s183 + $0x54] sm:$0xff]
        %v202 = vld [vmem:[%s183 + $0x5c] sm:$0xf]
        %v203 = vld [vmem:[%s183 + $0x60] sm:$0xff]
        %v204 = vld [vmem:[%s183 + $0x68] sm:$0xf]
        %v205 = vld [vmem:[%s183 + $0x6c] sm:$0xff]
        %v206 = vld [vmem:[%s183 + $0x74] sm:$0xf]
        %v207 = vld [vmem:[%s183 + $0x78] sm:$0xff]
        %v208 = vld [vmem:[%s183 + $0x80] sm:$0xf]
        %v209 = vld [vmem:[%s183 + $0x84] sm:$0xff]
        %v210 = vld [vmem:[%s183 + $0x8c] sm:$0xf]
        %v211 = vld [vmem:[%s183 + $0x90] sm:$0xff]
        %v212 = vld [vmem:[%s183 + $0x98] sm:$0xf]
        %v213 = vld [vmem:[%s183 + $0x9c] sm:$0xff]
        %v214 = vld [vmem:[%s183 + $0xa4] sm:$0xf]
        %v215 = vld [vmem:[%s183 + $0xa8] sm:$0xff]
        %v216 = vld [vmem:[%s183 + $0xb0] sm:$0xf]
        %v217 = vld [vmem:[%s183 + $0xb4] sm:$0xff]
        %v218 = vld [vmem:[%s183 + $0xbc] sm:$0xf]
        %v219 = vld [vmem:[%s183 + $0xc0] sm:$0xff]
        %v220 = vld [vmem:[%s183 + $0xc8] sm:$0xf]
        %v221 = vld [vmem:[%s183 + $0xcc] sm:$0xff]
        %v222 = vld [vmem:[%s183 + $0xd4] sm:$0xf]
        %v223 = vld [vmem:[%s183 + $0xd8] sm:$0xff]
        %v224 = vld [vmem:[%s183 + $0xe0] sm:$0xf]
        %v225 = vld [vmem:[%s183 + $0xe4] sm:$0xff]
        %v226 = vld [vmem:[%s183 + $0xec] sm:$0xf]
        %v227 = vld [vmem:[%s183 + $0xf0] sm:$0xff]
        %v228 = vld [vmem:[%s183 + $0xf8] sm:$0xf]
        %v229 = vld [vmem:[%s183 + $0xfc] sm:$0xff]
        %v230 = vld [vmem:[%s183 + $0x104] sm:$0xf]
        %v231 = vld [vmem:[%s183 + $0x108] sm:$0xff]
        %v232 = vld [vmem:[%s183 + $0x110] sm:$0xf]
        %v233 = vld [vmem:[%s183 + $0x114] sm:$0xff]
        %v234 = vld [vmem:[%s183 + $0x11c] sm:$0xf]
        %v235 = vld [vmem:[%s183 + $0x120] sm:$0xff]
        %v236 = vld [vmem:[%s183 + $0x128] sm:$0xf]
        %v237 = vld [vmem:[%s183 + $0x12c] sm:$0xff]
        %v238 = vld [vmem:[%s183 + $0x134] sm:$0xf]
        %v239 = vld [vmem:[%s183 + $0x138] sm:$0xff]
        %v240 = vld [vmem:[%s183 + $0x140] sm:$0xf]
        %v241 = vld [vmem:[%s183 + $0x144] sm:$0xff]
        %v242 = vld [vmem:[%s183 + $0x14c] sm:$0xf]
        %v243 = vld [vmem:[%s183 + $0x150] sm:$0xff]
        %v244 = vld [vmem:[%s183 + $0x158] sm:$0xf]
        %v245 = vld [vmem:[%s183 + $0x15c] sm:$0xff]
        %v246 = vld [vmem:[%s183 + $0x164] sm:$0xf]
        %v247 = vld [vmem:[%s183 + $0x168] sm:$0xff]
        %v248 = vld [vmem:[%s183 + $0x170] sm:$0xf]
        %v249 = vld [vmem:[%s183 + $0x174] sm:$0xff]
        %v250 = vld [vmem:[%s183 + $0x17c] sm:$0xf]
        %v251 = vunpack.c.l.bf16 %v187
        %v252 = vunpack.c.h.bf16 %v187
        %v253 = vunpack.c.l.bf16 %v188
        %v254 = vunpack.c.l.bf16 %v189
        %v255 = vunpack.c.h.bf16 %v189
        %v256 = vunpack.c.l.bf16 %v190
        %v257 = vunpack.c.l.bf16 %v191
        %v258 = vunpack.c.h.bf16 %v191
        %v259 = vunpack.c.l.bf16 %v192
        %v260 = vunpack.c.l.bf16 %v193
        %v261 = vunpack.c.h.bf16 %v193
        %v262 = vunpack.c.l.bf16 %v194
        %v263 = vunpack.c.l.bf16 %v195
        %v264 = vunpack.c.h.bf16 %v195
        %v265 = vunpack.c.l.bf16 %v196
        %v266 = vunpack.c.l.bf16 %v197
        %v267 = vunpack.c.h.bf16 %v197
        %v268 = vunpack.c.l.bf16 %v198
        %v269 = vunpack.c.l.bf16 %v199
        %v270 = vunpack.c.h.bf16 %v199
        %v271 = vunpack.c.l.bf16 %v200
        %v272 = vunpack.c.l.bf16 %v201
        %v273 = vunpack.c.h.bf16 %v201
        %v274 = vunpack.c.l.bf16 %v202
        %v275 = vunpack.c.l.bf16 %v203
        %v276 = vunpack.c.h.bf16 %v203
        %v277 = vunpack.c.l.bf16 %v204
        %v278 = vunpack.c.l.bf16 %v205
        %v279 = vunpack.c.h.bf16 %v205
        %v280 = vunpack.c.l.bf16 %v206
        %v281 = vunpack.c.l.bf16 %v207
        %v282 = vunpack.c.h.bf16 %v207
        %v283 = vunpack.c.l.bf16 %v208
        %v284 = vunpack.c.l.bf16 %v209
        %v285 = vunpack.c.h.bf16 %v209
        %v286 = vunpack.c.l.bf16 %v210
        %v287 = vunpack.c.l.bf16 %v211
        %v288 = vunpack.c.h.bf16 %v211
        %v289 = vunpack.c.l.bf16 %v212
        %v290 = vunpack.c.l.bf16 %v213
        %v291 = vunpack.c.h.bf16 %v213
        %v292 = vunpack.c.l.bf16 %v214
        %v293 = vunpack.c.l.bf16 %v215
        %v294 = vunpack.c.h.bf16 %v215
        %v295 = vunpack.c.l.bf16 %v216
        %v296 = vunpack.c.l.bf16 %v217
        %v297 = vunpack.c.h.bf16 %v217
        %v298 = vunpack.c.l.bf16 %v218
        %v299 = vunpack.c.l.bf16 %v219
        %v300 = vunpack.c.h.bf16 %v219
        %v301 = vunpack.c.l.bf16 %v220
        %v302 = vunpack.c.l.bf16 %v221
        %v303 = vunpack.c.h.bf16 %v221
        %v304 = vunpack.c.l.bf16 %v222
        %v305 = vunpack.c.l.bf16 %v223
        %v306 = vunpack.c.h.bf16 %v223
        %v307 = vunpack.c.l.bf16 %v224
        %v308 = vunpack.c.l.bf16 %v225
        %v309 = vunpack.c.h.bf16 %v225
        %v310 = vunpack.c.l.bf16 %v226
        %v311 = vunpack.c.l.bf16 %v227
        %v312 = vunpack.c.h.bf16 %v227
        %v313 = vunpack.c.l.bf16 %v228
        %v314 = vunpack.c.l.bf16 %v229
        %v315 = vunpack.c.h.bf16 %v229
        %v316 = vunpack.c.l.bf16 %v230
        %v317 = vunpack.c.l.bf16 %v231
        %v318 = vunpack.c.h.bf16 %v231
        %v319 = vunpack.c.l.bf16 %v232
        %v320 = vunpack.c.l.bf16 %v233
        %v321 = vunpack.c.h.bf16 %v233
        %v322 = vunpack.c.l.bf16 %v234
        %v323 = vunpack.c.l.bf16 %v235
        %v324 = vunpack.c.h.bf16 %v235
        %v325 = vunpack.c.l.bf16 %v236
        %v326 = vunpack.c.l.bf16 %v237
        %v327 = vunpack.c.h.bf16 %v237
        %v328 = vunpack.c.l.bf16 %v238
        %v329 = vunpack.c.l.bf16 %v239
        %v330 = vunpack.c.h.bf16 %v239
        %v331 = vunpack.c.l.bf16 %v240
        %v332 = vunpack.c.l.bf16 %v241
        %v333 = vunpack.c.h.bf16 %v241
        %v334 = vunpack.c.l.bf16 %v242
        %v335 = vunpack.c.l.bf16 %v243
        %v336 = vunpack.c.h.bf16 %v243
        %v337 = vunpack.c.l.bf16 %v244
        %v338 = vunpack.c.l.bf16 %v245
        %v339 = vunpack.c.h.bf16 %v245
        %v340 = vunpack.c.l.bf16 %v246
        %v341 = vunpack.c.l.bf16 %v247
        %v342 = vunpack.c.h.bf16 %v247
        %v343 = vunpack.c.l.bf16 %v248
        %v344 = vunpack.c.l.bf16 %v249
        %v345 = vunpack.c.h.bf16 %v249
        %v346 = vunpack.c.l.bf16 %v250
        %v347 = vmax.f32 %v251, 0.0
        %v348 = vmax.f32 %v252, 0.0
        %v349 = vmax.f32 %v253, 0.0
        %v350 = vmax.f32 %v254, 0.0
        %v351 = vmax.f32 %v255, 0.0
        %v352 = vmax.f32 %v256, 0.0
        %v353 = vmax.f32 %v257, 0.0
        %v354 = vmax.f32 %v258, 0.0
        %v355 = vmax.f32 %v259, 0.0
        %v356 = vmax.f32 %v260, 0.0
        %v357 = vmax.f32 %v261, 0.0
        %v358 = vmax.f32 %v262, 0.0
        %v359 = vmax.f32 %v263, 0.0
        %v360 = vmax.f32 %v264, 0.0
        %v361 = vmax.f32 %v265, 0.0
        %v362 = vmax.f32 %v266, 0.0
        %v363 = vmax.f32 %v267, 0.0
        %v364 = vmax.f32 %v268, 0.0
        %v365 = vmax.f32 %v269, 0.0
        %v366 = vmax.f32 %v270, 0.0
        %v367 = vmax.f32 %v271, 0.0
        %v368 = vmax.f32 %v272, 0.0
        %v369 = vmax.f32 %v273, 0.0
        %v370 = vmax.f32 %v274, 0.0
        %v371 = vmax.f32 %v275, 0.0
        %v372 = vmax.f32 %v276, 0.0
        %v373 = vmax.f32 %v277, 0.0
        %v374 = vmax.f32 %v278, 0.0
        %v375 = vmax.f32 %v279, 0.0
        %v376 = vmax.f32 %v280, 0.0
        %v377 = vmax.f32 %v281, 0.0
        %v378 = vmax.f32 %v282, 0.0
        %v379 = vmax.f32 %v283, 0.0
        %v380 = vmax.f32 %v284, 0.0
        %v381 = vmax.f32 %v285, 0.0
        %v382 = vmax.f32 %v286, 0.0
        %v383 = vmax.f32 %v287, 0.0
        %v384 = vmax.f32 %v288, 0.0
        %v385 = vmax.f32 %v289, 0.0
        %v386 = vmax.f32 %v290, 0.0
        %v387 = vmax.f32 %v291, 0.0
        %v388 = vmax.f32 %v292, 0.0
        %v389 = vmax.f32 %v293, 0.0
        %v390 = vmax.f32 %v294, 0.0
        %v391 = vmax.f32 %v295, 0.0
        %v392 = vmax.f32 %v296, 0.0
        %v393 = vmax.f32 %v297, 0.0
        %v394 = vmax.f32 %v298, 0.0
        %v395 = vmax.f32 %v299, 0.0
        %v396 = vmax.f32 %v300, 0.0
        %v397 = vmax.f32 %v301, 0.0
        %v398 = vmax.f32 %v302, 0.0
        %v399 = vmax.f32 %v303, 0.0
        %v400 = vmax.f32 %v304, 0.0
        %v401 = vmax.f32 %v305, 0.0
        %v402 = vmax.f32 %v306, 0.0
        %v403 = vmax.f32 %v307, 0.0
        %v404 = vmax.f32 %v308, 0.0
        %v405 = vmax.f32 %v309, 0.0
        %v406 = vmax.f32 %v310, 0.0
        %v407 = vmax.f32 %v311, 0.0
        %v408 = vmax.f32 %v312, 0.0
        %v409 = vmax.f32 %v313, 0.0
        %v410 = vmax.f32 %v314, 0.0
        %v411 = vmax.f32 %v315, 0.0
        %v412 = vmax.f32 %v316, 0.0
        %v413 = vmax.f32 %v317, 0.0
        %v414 = vmax.f32 %v318, 0.0
        %v415 = vmax.f32 %v319, 0.0
        %v416 = vmax.f32 %v320, 0.0
        %v417 = vmax.f32 %v321, 0.0
        %v418 = vmax.f32 %v322, 0.0
        %v419 = vmax.f32 %v323, 0.0
        %v420 = vmax.f32 %v324, 0.0
        %v421 = vmax.f32 %v325, 0.0
        %v422 = vmax.f32 %v326, 0.0
        %v423 = vmax.f32 %v327, 0.0
        %v424 = vmax.f32 %v328, 0.0
        %v425 = vmax.f32 %v329, 0.0
        %v426 = vmax.f32 %v330, 0.0
        %v427 = vmax.f32 %v331, 0.0
        %v428 = vmax.f32 %v332, 0.0
        %v429 = vmax.f32 %v333, 0.0
        %v430 = vmax.f32 %v334, 0.0
        %v431 = vmax.f32 %v335, 0.0
        %v432 = vmax.f32 %v336, 0.0
        %v433 = vmax.f32 %v337, 0.0
        %v434 = vmax.f32 %v338, 0.0
        %v435 = vmax.f32 %v339, 0.0
        %v436 = vmax.f32 %v340, 0.0
        %v437 = vmax.f32 %v341, 0.0
        %v438 = vmax.f32 %v342, 0.0
        %v439 = vmax.f32 %v343, 0.0
        %v440 = vmax.f32 %v344, 0.0
        %v441 = vmax.f32 %v345, 0.0
        %v442 = vmax.f32 %v346, 0.0
        %v443 = vpack.c.bf16 %v350, %v347
        %v444 = vpack.c.bf16 %v351, %v348
        %v445 = vpack.c.bf16 %v352, %v349
        %v446 = vpack.c.bf16 %v356, %v353
        %v447 = vpack.c.bf16 %v357, %v354
        %v448 = vpack.c.bf16 %v358, %v355
        %v449 = vpack.c.bf16 %v362, %v359
        %v450 = vpack.c.bf16 %v363, %v360
        %v451 = vpack.c.bf16 %v364, %v361
        %v452 = vpack.c.bf16 %v368, %v365
        %v453 = vpack.c.bf16 %v369, %v366
        %v454 = vpack.c.bf16 %v370, %v367
        %v455 = vpack.c.bf16 %v374, %v371
        %v456 = vpack.c.bf16 %v375, %v372
        %v457 = vpack.c.bf16 %v376, %v373
        %v458 = vpack.c.bf16 %v380, %v377
        %v459 = vpack.c.bf16 %v381, %v378
        %v460 = vpack.c.bf16 %v382, %v379
        %v461 = vpack.c.bf16 %v386, %v383
        %v462 = vpack.c.bf16 %v387, %v384
        %v463 = vpack.c.bf16 %v388, %v385
        %v464 = vpack.c.bf16 %v392, %v389
        %v465 = vpack.c.bf16 %v393, %v390
        %v466 = vpack.c.bf16 %v394, %v391
        %v467 = vpack.c.bf16 %v398, %v395
        %v468 = vpack.c.bf16 %v399, %v396
        %v469 = vpack.c.bf16 %v400, %v397
        %v470 = vpack.c.bf16 %v404, %v401
        %v471 = vpack.c.bf16 %v405, %v402
        %v472 = vpack.c.bf16 %v406, %v403
        %v473 = vpack.c.bf16 %v410, %v407
        %v474 = vpack.c.bf16 %v411, %v408
        %v475 = vpack.c.bf16 %v412, %v409
        %v476 = vpack.c.bf16 %v416, %v413
        %v477 = vpack.c.bf16 %v417, %v414
        %v478 = vpack.c.bf16 %v418, %v415
        %v479 = vpack.c.bf16 %v422, %v419
        %v480 = vpack.c.bf16 %v423, %v420
        %v481 = vpack.c.bf16 %v424, %v421
        %v482 = vpack.c.bf16 %v428, %v425
        %v483 = vpack.c.bf16 %v429, %v426
        %v484 = vpack.c.bf16 %v430, %v427
        %v485 = vpack.c.bf16 %v434, %v431
        %v486 = vpack.c.bf16 %v435, %v432
        %v487 = vpack.c.bf16 %v436, %v433
        %v488 = vpack.c.bf16 %v440, %v437
        %v489 = vpack.c.bf16 %v441, %v438
        %v490 = vpack.c.bf16 %v442, %v439
        %v491 = vld [vmem:[%s1] sm:$0xf]
        %v492 = vld [vmem:[%s1 + $0x4] sm:$0xf]
        %v493 = vld [vmem:[%s1 + $0x8] sm:$0xf]
        %v494 = vld [vmem:[%s1 + $0xc] sm:$0xf]
        %v495 = vld [vmem:[%s1 + $0x10] sm:$0xf]
        %v496 = vld [vmem:[%s1 + $0x14] sm:$0xf]
        %v497 = vld [vmem:[%s1 + $0x18] sm:$0xf]
        %v498 = vld [vmem:[%s1 + $0x1c] sm:$0xf]
        %v499 = vld [vmem:[%s1 + $0x20] sm:$0xf]
        %v500 = vld [vmem:[%s1 + $0x24] sm:$0xf]
        %v501 = vld [vmem:[%s1 + $0x28] sm:$0xf]
        %v502 = vld [vmem:[%s1 + $0x2c] sm:$0xf]
        %v503 = vld [vmem:[%s1 + $0x30] sm:$0xf]
        %v504 = vld [vmem:[%s1 + $0x34] sm:$0xf]
        %v505 = vld [vmem:[%s1 + $0x38] sm:$0xf]
        %v506 = vld [vmem:[%s1 + $0x3c] sm:$0xf]
        %v507 = vld [vmem:[%s1 + $0x40] sm:$0xf]
        %v508 = vld [vmem:[%s1 + $0x44] sm:$0xf]
        %v509 = vld [vmem:[%s1 + $0x48] sm:$0xf]
        %v510 = vld [vmem:[%s1 + $0x4c] sm:$0xf]
        %v511 = vld [vmem:[%s1 + $0x50] sm:$0xf]
        %v512 = vld [vmem:[%s1 + $0x54] sm:$0xf]
        %v513 = vld [vmem:[%s1 + $0x58] sm:$0xf]
        %v514 = vld [vmem:[%s1 + $0x5c] sm:$0xf]
        %v515 = vld [vmem:[%s1 + $0x60] sm:$0xf]
        %v516 = vld [vmem:[%s1 + $0x64] sm:$0xf]
        %v517 = vld [vmem:[%s1 + $0x68] sm:$0xf]
        %v518 = vld [vmem:[%s1 + $0x6c] sm:$0xf]
        %v519 = vld [vmem:[%s1 + $0x70] sm:$0xf]
        %v520 = vld [vmem:[%s1 + $0x74] sm:$0xf]
        %v521 = vld [vmem:[%s1 + $0x78] sm:$0xf]
        %v522 = vld [vmem:[%s1 + $0x7c] sm:$0xf]
        %v523 = vld [vmem:[%s1 + $0x80] sm:$0xf]
        %v524 = vld [vmem:[%s1 + $0x84] sm:$0xf]
        %v525 = vld [vmem:[%s1 + $0x88] sm:$0xf]
        %v526 = vld [vmem:[%s1 + $0x8c] sm:$0xf]
        %v563 = vunpack.c.l.b16 %v491
        %v564 = vunpack.c.l.b16 %v492
        %v565 = vunpack.c.l.b16 %v493
        %v566 = vunpack.c.l.b16 %v494
        %v567 = vunpack.c.l.b16 %v495
        %v568 = vunpack.c.l.b16 %v496
        %v569 = vunpack.c.l.b16 %v497
        %v570 = vunpack.c.l.b16 %v498
        %v571 = vunpack.c.l.b16 %v499
        %v572 = vunpack.c.l.b16 %v500
        %v573 = vunpack.c.l.b16 %v501
        %v574 = vunpack.c.l.b16 %v502
        %v575 = vunpack.c.l.b16 %v503
        %v576 = vunpack.c.l.b16 %v504
        %v577 = vunpack.c.l.b16 %v505
        %v578 = vunpack.c.l.b16 %v506
        %v579 = vunpack.c.l.b16 %v507
        %v580 = vunpack.c.l.b16 %v508
        %v581 = vunpack.c.l.b16 %v509
        %v582 = vunpack.c.l.b16 %v510
        %v583 = vunpack.c.l.b16 %v511
        %v584 = vunpack.c.l.b16 %v512
        %v585 = vunpack.c.l.b16 %v513
        %v586 = vunpack.c.l.b16 %v514
        %v587 = vunpack.c.l.b16 %v515
        %v588 = vunpack.c.l.b16 %v516
        %v589 = vunpack.c.l.b16 %v517
        %v590 = vunpack.c.l.b16 %v518
        %v591 = vunpack.c.l.b16 %v519
        %v592 = vunpack.c.l.b16 %v520
        %v593 = vunpack.c.l.b16 %v521
        %v594 = vunpack.c.l.b16 %v522
        %v595 = vunpack.c.l.b16 %v523
        %v596 = vunpack.c.l.b16 %v524
        %v597 = vunpack.c.l.b16 %v525
        %v598 = vunpack.c.l.b16 %v526
        %v599 = vpack.c.b16 %v564, %v563
        %v600 = vpack.c.b16 %v566, %v565
        %v601 = vpack.c.b16 %v568, %v567
        %v602 = vpack.c.b16 %v570, %v569
        %v603 = vpack.c.b16 %v572, %v571
        %v604 = vpack.c.b16 %v574, %v573
        %v605 = vpack.c.b16 %v576, %v575
        %v606 = vpack.c.b16 %v578, %v577
        %v607 = vpack.c.b16 %v580, %v579
        %v608 = vpack.c.b16 %v582, %v581
        %v609 = vpack.c.b16 %v584, %v583
        %v610 = vpack.c.b16 %v586, %v585
        %v611 = vpack.c.b16 %v588, %v587
        %v612 = vpack.c.b16 %v590, %v589
        %v613 = vpack.c.b16 %v592, %v591
        %v614 = vpack.c.b16 %v594, %v593
        %v615 = vpack.c.b16 %v596, %v595
        %v616 = vpack.c.b16 %v598, %v597
        %vm635 = vcmask 261120
        %v637 = vsel %vm635, %v445, 0
        %v640 = vsel %vm635, %v448, 0
        %v643 = vsel %vm635, %v451, 0
        %v646 = vsel %vm635, %v454, 0
        %v649 = vsel %vm635, %v457, 0
        %v652 = vsel %vm635, %v460, 0
        %v655 = vsel %vm635, %v463, 0
        %v658 = vsel %vm635, %v466, 0
        %v661 = vsel %vm635, %v469, 0
        %v664 = vsel %vm635, %v472, 0
        %v667 = vsel %vm635, %v475, 0
        %v670 = vsel %vm635, %v478, 0
        %v673 = vsel %vm635, %v481, 0
        %v676 = vsel %vm635, %v484, 0
        %v679 = vsel %vm635, %v487, 0
        %v682 = vsel %vm635, %v490, 0
        %684 = vmatpush.bf16.msra.mxu0 %v606
        %685 = vmatpush.bf16.msra.mxu0 %v605
        %686 = vmatpush.bf16.msra.mxu0 %v604
        %687 = vmatpush.bf16.msra.mxu0 %v603
        %688 = vmatpush.bf16.msra.mxu0 %v602
        %689 = vmatpush.bf16.msra.mxu0 %v601
        %690 = vmatpush.bf16.msra.mxu0 %v600
        %691 = vmatpush.bf16.msra.mxu0 %v599
        %692 = vmatmul.bf16.gmra.mxu0 %v443
        %v693 = vpop.f32.mrf.mxu0
        %v694 = vadd.f32 0.0, %v693
        %v695 = vpop.f32.mrf.mxu0
        %v696 = vadd.f32 0.0, %v695
        %697 = vmatmul.bf16.gmra.mxu0 %v446
        %v698 = vpop.f32.mrf.mxu0
        %v699 = vadd.f32 0.0, %v698
        %v700 = vpop.f32.mrf.mxu0
        %v701 = vadd.f32 0.0, %v700
        %702 = vmatmul.bf16.gmra.mxu0 %v449
        %v703 = vpop.f32.mrf.mxu0
        %v704 = vadd.f32 0.0, %v703
        %v705 = vpop.f32.mrf.mxu0
        %v706 = vadd.f32 0.0, %v705
        %707 = vmatmul.bf16.gmra.mxu0 %v452
        %v708 = vpop.f32.mrf.mxu0
        %v709 = vadd.f32 0.0, %v708
        %v710 = vpop.f32.mrf.mxu0
        %v711 = vadd.f32 0.0, %v710
        %712 = vmatmul.bf16.gmra.mxu0 %v455
        %v713 = vpop.f32.mrf.mxu0
        %v714 = vadd.f32 0.0, %v713
        %v715 = vpop.f32.mrf.mxu0
        %v716 = vadd.f32 0.0, %v715
        %717 = vmatmul.bf16.gmra.mxu0 %v458
        %v718 = vpop.f32.mrf.mxu0
        %v719 = vadd.f32 0.0, %v718
        %v720 = vpop.f32.mrf.mxu0
        %v721 = vadd.f32 0.0, %v720
        %722 = vmatmul.bf16.gmra.mxu0 %v461
        %v723 = vpop.f32.mrf.mxu0
        %v724 = vadd.f32 0.0, %v723
        %v725 = vpop.f32.mrf.mxu0
        %v726 = vadd.f32 0.0, %v725
        %727 = vmatmul.bf16.gmra.mxu0 %v464
        %v728 = vpop.f32.mrf.mxu0
        %v729 = vadd.f32 0.0, %v728
        %v730 = vpop.f32.mrf.mxu0
        %v731 = vadd.f32 0.0, %v730
        %732 = vmatmul.bf16.gmra.mxu0 %v467
        %v733 = vpop.f32.mrf.mxu0
        %v734 = vadd.f32 0.0, %v733
        %v735 = vpop.f32.mrf.mxu0
        %v736 = vadd.f32 0.0, %v735
        %737 = vmatmul.bf16.gmra.mxu0 %v470
        %v738 = vpop.f32.mrf.mxu0
        %v739 = vadd.f32 0.0, %v738
        %v740 = vpop.f32.mrf.mxu0
        %v741 = vadd.f32 0.0, %v740
        %742 = vmatmul.bf16.gmra.mxu0 %v473
        %v743 = vpop.f32.mrf.mxu0
        %v744 = vadd.f32 0.0, %v743
        %v745 = vpop.f32.mrf.mxu0
        %v746 = vadd.f32 0.0, %v745
        %747 = vmatmul.bf16.gmra.mxu0 %v476
        %v748 = vpop.f32.mrf.mxu0
        %v749 = vadd.f32 0.0, %v748
        %v750 = vpop.f32.mrf.mxu0
        %v751 = vadd.f32 0.0, %v750
        %752 = vmatmul.bf16.gmra.mxu0 %v479
        %v753 = vpop.f32.mrf.mxu0
        %v754 = vadd.f32 0.0, %v753
        %v755 = vpop.f32.mrf.mxu0
        %v756 = vadd.f32 0.0, %v755
        %757 = vmatmul.bf16.gmra.mxu0 %v482
        %v758 = vpop.f32.mrf.mxu0
        %v759 = vadd.f32 0.0, %v758
        %v760 = vpop.f32.mrf.mxu0
        %v761 = vadd.f32 0.0, %v760
        %762 = vmatmul.bf16.gmra.mxu0 %v485
        %v763 = vpop.f32.mrf.mxu0
        %v764 = vadd.f32 0.0, %v763
        %v765 = vpop.f32.mrf.mxu0
        %v766 = vadd.f32 0.0, %v765
        %767 = vmatmul.bf16.gmra.mxu0 %v488
        %v768 = vpop.f32.mrf.mxu0
        %v769 = vadd.f32 0.0, %v768
        %v770 = vpop.f32.mrf.mxu0
        %v771 = vadd.f32 0.0, %v770
        %772 = vdwg.mxu0
        %773 = vmatpush.bf16.msra.mxu0 %v614
        %774 = vmatpush.bf16.msra.mxu0 %v613
        %775 = vmatpush.bf16.msra.mxu0 %v612
        %776 = vmatpush.bf16.msra.mxu0 %v611
        %777 = vmatpush.bf16.msra.mxu0 %v610
        %778 = vmatpush.bf16.msra.mxu0 %v609
        %779 = vmatpush.bf16.msra.mxu0 %v608
        %780 = vmatpush.bf16.msra.mxu0 %v607
        %781 = vmatmul.bf16.gmra.mxu0 %v444
        %v782 = vpop.f32.mrf.mxu0
        %v783 = vadd.f32 %v694, %v782
        %v784 = vpop.f32.mrf.mxu0
        %v785 = vadd.f32 %v696, %v784
        %786 = vmatmul.bf16.gmra.mxu0 %v447
        %v787 = vpop.f32.mrf.mxu0
        %v788 = vadd.f32 %v699, %v787
        %v789 = vpop.f32.mrf.mxu0
        %v790 = vadd.f32 %v701, %v789
        %791 = vmatmul.bf16.gmra.mxu0 %v450
        %v792 = vpop.f32.mrf.mxu0
        %v793 = vadd.f32 %v704, %v792
        %v794 = vpop.f32.mrf.mxu0
        %v795 = vadd.f32 %v706, %v794
        %796 = vmatmul.bf16.gmra.mxu0 %v453
        %v797 = vpop.f32.mrf.mxu0
        %v798 = vadd.f32 %v709, %v797
        %v799 = vpop.f32.mrf.mxu0
        %v800 = vadd.f32 %v711, %v799
        %801 = vmatmul.bf16.gmra.mxu0 %v456
        %v802 = vpop.f32.mrf.mxu0
        %v803 = vadd.f32 %v714, %v802
        %v804 = vpop.f32.mrf.mxu0
        %v805 = vadd.f32 %v716, %v804
        %806 = vmatmul.bf16.gmra.mxu0 %v459
        %v807 = vpop.f32.mrf.mxu0
        %v808 = vadd.f32 %v719, %v807
        %v809 = vpop.f32.mrf.mxu0
        %v810 = vadd.f32 %v721, %v809
        %811 = vmatmul.bf16.gmra.mxu0 %v462
        %v812 = vpop.f32.mrf.mxu0
        %v813 = vadd.f32 %v724, %v812
        %v814 = vpop.f32.mrf.mxu0
        %v815 = vadd.f32 %v726, %v814
        %816 = vmatmul.bf16.gmra.mxu0 %v465
        %v817 = vpop.f32.mrf.mxu0
        %v818 = vadd.f32 %v729, %v817
        %v819 = vpop.f32.mrf.mxu0
        %v820 = vadd.f32 %v731, %v819
        %821 = vmatmul.bf16.gmra.mxu0 %v468
        %v822 = vpop.f32.mrf.mxu0
        %v823 = vadd.f32 %v734, %v822
        %v824 = vpop.f32.mrf.mxu0
        %v825 = vadd.f32 %v736, %v824
        %826 = vmatmul.bf16.gmra.mxu0 %v471
        %v827 = vpop.f32.mrf.mxu0
        %v828 = vadd.f32 %v739, %v827
        %v829 = vpop.f32.mrf.mxu0
        %v830 = vadd.f32 %v741, %v829
        %831 = vmatmul.bf16.gmra.mxu0 %v474
        %v832 = vpop.f32.mrf.mxu0
        %v833 = vadd.f32 %v744, %v832
        %v834 = vpop.f32.mrf.mxu0
        %v835 = vadd.f32 %v746, %v834
        %836 = vmatmul.bf16.gmra.mxu0 %v477
        %v837 = vpop.f32.mrf.mxu0
        %v838 = vadd.f32 %v749, %v837
        %v839 = vpop.f32.mrf.mxu0
        %v840 = vadd.f32 %v751, %v839
        %841 = vmatmul.bf16.gmra.mxu0 %v480
        %v842 = vpop.f32.mrf.mxu0
        %v843 = vadd.f32 %v754, %v842
        %v844 = vpop.f32.mrf.mxu0
        %v845 = vadd.f32 %v756, %v844
        %846 = vmatmul.bf16.gmra.mxu0 %v483
        %v847 = vpop.f32.mrf.mxu0
        %v848 = vadd.f32 %v759, %v847
        %v849 = vpop.f32.mrf.mxu0
        %v850 = vadd.f32 %v761, %v849
        %851 = vmatmul.bf16.gmra.mxu0 %v486
        %v852 = vpop.f32.mrf.mxu0
        %v853 = vadd.f32 %v764, %v852
        %v854 = vpop.f32.mrf.mxu0
        %v855 = vadd.f32 %v766, %v854
        %856 = vmatmul.bf16.gmra.mxu0 %v489
        %v857 = vpop.f32.mrf.mxu0
        %v858 = vadd.f32 %v769, %v857
        %v859 = vpop.f32.mrf.mxu0
        %v860 = vadd.f32 %v771, %v859
        %861 = vdwg.mxu0
        %862 = vmatpush.bf16.msra.mxu0 0
        %863 = vmatpush.bf16.msra.mxu0 0
        %864 = vmatpush.bf16.msra.mxu0 0
        %865 = vmatpush.bf16.msra.mxu0 0
        %866 = vmatpush.bf16.msra.mxu0 0
        %867 = vmatpush.bf16.msra.mxu0 0
        %868 = vmatpush.bf16.msra.mxu0 %v616
        %869 = vmatpush.bf16.msra.mxu0 %v615
        %870 = vmatmul.bf16.gmra.mxu0 %v637
        %v871 = vpop.f32.mrf.mxu0
        %v872 = vadd.f32 %v783, %v871
        %v873 = vpop.f32.mrf.mxu0
        %v874 = vadd.f32 %v785, %v873
        %875 = vmatmul.bf16.gmra.mxu0 %v640
        %v876 = vpop.f32.mrf.mxu0
        %v877 = vadd.f32 %v788, %v876
        %v878 = vpop.f32.mrf.mxu0
        %v879 = vadd.f32 %v790, %v878
        %880 = vmatmul.bf16.gmra.mxu0 %v643
        %v881 = vpop.f32.mrf.mxu0
        %v882 = vadd.f32 %v793, %v881
        %v883 = vpop.f32.mrf.mxu0
        %v884 = vadd.f32 %v795, %v883
        %885 = vmatmul.bf16.gmra.mxu0 %v646
        %v886 = vpop.f32.mrf.mxu0
        %v887 = vadd.f32 %v798, %v886
        %v888 = vpop.f32.mrf.mxu0
        %v889 = vadd.f32 %v800, %v888
        %890 = vmatmul.bf16.gmra.mxu0 %v649
        %v891 = vpop.f32.mrf.mxu0
        %v892 = vadd.f32 %v803, %v891
        %v893 = vpop.f32.mrf.mxu0
        %v894 = vadd.f32 %v805, %v893
        %895 = vmatmul.bf16.gmra.mxu0 %v652
        %v896 = vpop.f32.mrf.mxu0
        %v897 = vadd.f32 %v808, %v896
        %v898 = vpop.f32.mrf.mxu0
        %v899 = vadd.f32 %v810, %v898
        %900 = vmatmul.bf16.gmra.mxu0 %v655
        %v901 = vpop.f32.mrf.mxu0
        %v902 = vadd.f32 %v813, %v901
        %v903 = vpop.f32.mrf.mxu0
        %v904 = vadd.f32 %v815, %v903
        %905 = vmatmul.bf16.gmra.mxu0 %v658
        %v906 = vpop.f32.mrf.mxu0
        %v907 = vadd.f32 %v818, %v906
        %v908 = vpop.f32.mrf.mxu0
        %v909 = vadd.f32 %v820, %v908
        %910 = vmatmul.bf16.gmra.mxu0 %v661
        %v911 = vpop.f32.mrf.mxu0
        %v912 = vadd.f32 %v823, %v911
        %v913 = vpop.f32.mrf.mxu0
        %v914 = vadd.f32 %v825, %v913
        %915 = vmatmul.bf16.gmra.mxu0 %v664
        %v916 = vpop.f32.mrf.mxu0
        %v917 = vadd.f32 %v828, %v916
        %v918 = vpop.f32.mrf.mxu0
        %v919 = vadd.f32 %v830, %v918
        %920 = vmatmul.bf16.gmra.mxu0 %v667
        %v921 = vpop.f32.mrf.mxu0
        %v922 = vadd.f32 %v833, %v921
        %v923 = vpop.f32.mrf.mxu0
        %v924 = vadd.f32 %v835, %v923
        %925 = vmatmul.bf16.gmra.mxu0 %v670
        %v926 = vpop.f32.mrf.mxu0
        %v927 = vadd.f32 %v838, %v926
        %v928 = vpop.f32.mrf.mxu0
        %v929 = vadd.f32 %v840, %v928
        %930 = vmatmul.bf16.gmra.mxu0 %v673
        %v931 = vpop.f32.mrf.mxu0
        %v932 = vadd.f32 %v843, %v931
        %v933 = vpop.f32.mrf.mxu0
        %v934 = vadd.f32 %v845, %v933
        %935 = vmatmul.bf16.gmra.mxu0 %v676
        %v936 = vpop.f32.mrf.mxu0
        %v937 = vadd.f32 %v848, %v936
        %v938 = vpop.f32.mrf.mxu0
        %v939 = vadd.f32 %v850, %v938
        %940 = vmatmul.bf16.gmra.mxu0 %v679
        %v941 = vpop.f32.mrf.mxu0
        %v942 = vadd.f32 %v853, %v941
        %v943 = vpop.f32.mrf.mxu0
        %v944 = vadd.f32 %v855, %v943
        %945 = vmatmul.bf16.gmra.mxu0 %v682
        %v946 = vpop.f32.mrf.mxu0
        %v947 = vadd.f32 %v858, %v946
        %v948 = vpop.f32.mrf.mxu0
        %v949 = vadd.f32 %v860, %v948
        %950 = vdwg.mxu0
        %951 = vst [vmem:[%s170] sm:$0xff] %v872
        %952 = vst [vmem:[%s170 + $0x8] sm:$0xff] %v874
        %953 = vst [vmem:[%s170 + $0x10] sm:$0xff] %v877
        %954 = vst [vmem:[%s170 + $0x18] sm:$0xff] %v879
        %955 = vst [vmem:[%s170 + $0x20] sm:$0xff] %v882
        %956 = vst [vmem:[%s170 + $0x28] sm:$0xff] %v884
        %957 = vst [vmem:[%s170 + $0x30] sm:$0xff] %v887
        %958 = vst [vmem:[%s170 + $0x38] sm:$0xff] %v889
        %959 = vst [vmem:[%s170 + $0x40] sm:$0xff] %v892
        %960 = vst [vmem:[%s170 + $0x48] sm:$0xff] %v894
        %961 = vst [vmem:[%s170 + $0x50] sm:$0xff] %v897
        %962 = vst [vmem:[%s170 + $0x58] sm:$0xff] %v899
        %963 = vst [vmem:[%s170 + $0x60] sm:$0xff] %v902
        %964 = vst [vmem:[%s170 + $0x68] sm:$0xff] %v904
        %965 = vst [vmem:[%s170 + $0x70] sm:$0xff] %v907
        %966 = vst [vmem:[%s170 + $0x78] sm:$0xff] %v909
        %967 = vst [vmem:[%s170 + $0x80] sm:$0xff] %v912
        %968 = vst [vmem:[%s170 + $0x88] sm:$0xff] %v914
        %969 = vst [vmem:[%s170 + $0x90] sm:$0xff] %v917
        %970 = vst [vmem:[%s170 + $0x98] sm:$0xff] %v919
        %971 = vst [vmem:[%s170 + $0xa0] sm:$0xff] %v922
        %972 = vst [vmem:[%s170 + $0xa8] sm:$0xff] %v924
        %973 = vst [vmem:[%s170 + $0xb0] sm:$0xff] %v927
        %974 = vst [vmem:[%s170 + $0xb8] sm:$0xff] %v929
        %975 = vst [vmem:[%s170 + $0xc0] sm:$0xff] %v932
        %976 = vst [vmem:[%s170 + $0xc8] sm:$0xff] %v934
        %977 = vst [vmem:[%s170 + $0xd0] sm:$0xff] %v937
        %978 = vst [vmem:[%s170 + $0xd8] sm:$0xff] %v939
        %979 = vst [vmem:[%s170 + $0xe0] sm:$0xff] %v942
        %980 = vst [vmem:[%s170 + $0xe8] sm:$0xff] %v944
        %981 = vst [vmem:[%s170 + $0xf0] sm:$0xff] %v947
        %982 = vst [vmem:[%s170 + $0xf8] sm:$0xff] %v949
        %v983 = vadd.f32 %v872, %v874
        %v984 = vadd.f32 %v983, %v877
        %v985 = vadd.f32 %v984, %v879
        %v986 = vadd.f32 %v985, %v882
        %v987 = vadd.f32 %v986, %v884
        %v988 = vadd.f32 %v987, %v887
        %v989 = vadd.f32 %v988, %v889
        %v990 = vadd.f32 %v989, %v892
        %v991 = vadd.f32 %v990, %v894
        %v992 = vadd.f32 %v991, %v897
        %v993 = vadd.f32 %v992, %v899
        %v994 = vadd.f32 %v993, %v902
        %v995 = vadd.f32 %v994, %v904
        %v996 = vadd.f32 %v995, %v907
        %v997 = vadd.f32 %v996, %v909
        %v998 = vadd.f32 %v997, %v912
        %v999 = vadd.f32 %v998, %v914
        %v1000 = vadd.f32 %v999, %v917
        %v1001 = vadd.f32 %v1000, %v919
        %v1002 = vadd.f32 %v1001, %v922
        %v1003 = vadd.f32 %v1002, %v924
        %v1004 = vadd.f32 %v1003, %v927
        %v1005 = vadd.f32 %v1004, %v929
        %v1006 = vadd.f32 %v1005, %v932
        %v1007 = vadd.f32 %v1006, %v934
        %v1008 = vadd.f32 %v1007, %v937
        %v1009 = vadd.f32 %v1008, %v939
        %v1010 = vadd.f32 %v1009, %v942
        %v1011 = vadd.f32 %v1010, %v944
        %v1012 = vadd.f32 %v1011, %v947
        %v1013 = vadd.f32 %v1012, %v949
        %v1014 = vrot.slane %v1013, 4
        %v1015 = vadd.f32 %v1013, %v1014
        %v1016 = vrot.slane %v1015, 2
        %v1017 = vadd.f32 %v1015, %v1016
        %v1018 = vrot.slane %v1017, 1
        %v1019 = vadd.f32 %v1017, %v1018
        %v1020 = vmul.f32 %v872, %v872
        %v1021 = vmul.f32 %v874, %v874
        %v1022 = vmul.f32 %v877, %v877
        %v1023 = vmul.f32 %v879, %v879
        %v1024 = vmul.f32 %v882, %v882
        %v1025 = vmul.f32 %v884, %v884
        %v1026 = vmul.f32 %v887, %v887
        %v1027 = vmul.f32 %v889, %v889
        %v1028 = vmul.f32 %v892, %v892
        %v1029 = vmul.f32 %v894, %v894
        %v1030 = vmul.f32 %v897, %v897
        %v1031 = vmul.f32 %v899, %v899
        %v1032 = vmul.f32 %v902, %v902
        %v1033 = vmul.f32 %v904, %v904
        %v1034 = vmul.f32 %v907, %v907
        %v1035 = vmul.f32 %v909, %v909
        %v1036 = vmul.f32 %v912, %v912
        %v1037 = vmul.f32 %v914, %v914
        %v1038 = vmul.f32 %v917, %v917
        %v1039 = vmul.f32 %v919, %v919
        %v1040 = vmul.f32 %v922, %v922
        %v1041 = vmul.f32 %v924, %v924
        %v1042 = vmul.f32 %v927, %v927
        %v1043 = vmul.f32 %v929, %v929
        %v1044 = vmul.f32 %v932, %v932
        %v1045 = vmul.f32 %v934, %v934
        %v1046 = vmul.f32 %v937, %v937
        %v1047 = vmul.f32 %v939, %v939
        %v1048 = vmul.f32 %v942, %v942
        %v1049 = vmul.f32 %v944, %v944
        %v1050 = vmul.f32 %v947, %v947
        %v1051 = vmul.f32 %v949, %v949
        %v1052 = vadd.f32 %v1020, %v1021
        %v1053 = vadd.f32 %v1052, %v1022
        %v1054 = vadd.f32 %v1053, %v1023
        %v1055 = vadd.f32 %v1054, %v1024
        %v1056 = vadd.f32 %v1055, %v1025
        %v1057 = vadd.f32 %v1056, %v1026
        %v1058 = vadd.f32 %v1057, %v1027
        %v1059 = vadd.f32 %v1058, %v1028
        %v1060 = vadd.f32 %v1059, %v1029
        %v1061 = vadd.f32 %v1060, %v1030
        %v1062 = vadd.f32 %v1061, %v1031
        %v1063 = vadd.f32 %v1062, %v1032
        %v1064 = vadd.f32 %v1063, %v1033
        %v1065 = vadd.f32 %v1064, %v1034
        %v1066 = vadd.f32 %v1065, %v1035
        %v1067 = vadd.f32 %v1066, %v1036
        %v1068 = vadd.f32 %v1067, %v1037
        %v1069 = vadd.f32 %v1068, %v1038
        %v1070 = vadd.f32 %v1069, %v1039
        %v1071 = vadd.f32 %v1070, %v1040
        %v1072 = vadd.f32 %v1071, %v1041
        %v1073 = vadd.f32 %v1072, %v1042
        %v1074 = vadd.f32 %v1073, %v1043
        %v1075 = vadd.f32 %v1074, %v1044
        %v1076 = vadd.f32 %v1075, %v1045
        %v1077 = vadd.f32 %v1076, %v1046
        %v1078 = vadd.f32 %v1077, %v1047
        %v1079 = vadd.f32 %v1078, %v1048
        %v1080 = vadd.f32 %v1079, %v1049
        %v1081 = vadd.f32 %v1080, %v1050
        %v1082 = vadd.f32 %v1081, %v1051
        %v1083 = vrot.slane %v1082, 4
        %v1084 = vadd.f32 %v1082, %v1083
        %v1085 = vrot.slane %v1084, 2
        %v1086 = vadd.f32 %v1084, %v1085
        %v1087 = vrot.slane %v1086, 1
        %v1088 = vadd.f32 %v1086, %v1087
        %vm1089 = vcmask 1040384
        %v1090 = vsel %vm1089, %v1019, %v1088
        %1091 = vst [vmem:[%s177] sm:$0x3] %v1090
        %s1092 = sand.u32 %s76, 1
        %s1093 = scalar_lea.sflag [#allocation3], %s1092
        %s1094 = sand.u32 %s76, 1
        %s1095 = smul.addr %s1094, 256
        %s1096 = scalar_lea.vmem [#allocation2], %s1095
        %s1097 = sand.u32 %s102, 1
        %s1098 = scalar_lea.sflag [#allocation5], %s1097
        %s1099 = sand.u32 %s102, 1
        %s1100 = smul.addr %s1099, 2
        %s1101 = scalar_lea.vmem [#allocation4], %s1100
        // Predicated region
        $region29: #{tpu_custom_call.1} parent=27 // pred_check
          %p1102 = pneg %p86
        $region30: #{tpu_custom_call.1} parent=27 // pred_check_branch
          %1104 = sbr.rel (%p1102) target = $region32
        $region31: #{tpu_custom_call.1} parent=27 // pred_region
          %s1105 = smul.u32 32, %s21
          %1107 = vsyncadd %s1093, 0
          %s1108 = smul.addr %s1105, 8
          %s1109 = scalar_lea.hbm %s2, %s1108
          %s1110 = sshll.u32 %s1096, 4
          %s1111 = int_to_ptr.vmem [resolvable:$true] %s1110
          %s1112 = sshll.u32 %s1109, 4
          %s1113 = int_to_ptr.hbm [resolvable:$true] %s1112
          %1118 = dma.vmem_to_hbm [thread:$0]  %s1111, 4096, %s1113, %s1093, 128, 128, 8
        $region32: #{tpu_custom_call.1} parent=27 // pred_fallthru
          _
        // Predicated region
        $region33: #{tpu_custom_call.1} parent=27 // pred_check
          %p1119 = pneg %p112
        $region34: #{tpu_custom_call.1} parent=27 // pred_check_branch
          %1121 = sbr.rel (%p1119) target = $region36
        $region35: #{tpu_custom_call.1} parent=27 // pred_region
          %1123 = vsyncadd %s1098, 0
          %s1124 = smul.addr %s21, 2
          %s1125 = scalar_lea.hbm %s3, %s1124
          %s1127 = sshll.u32 %s1101, 4
          %s1128 = int_to_ptr.vmem [resolvable:$true] %s1127
          %s1129 = sshll.u32 %s1125, 4
          %s1130 = int_to_ptr.hbm [resolvable:$true] %s1129
          %1132 = dma.vmem_to_hbm [thread:$0]  %s1128, 32, %s1130, %s1098
        $region36: #{tpu_custom_call.1} parent=27 // pred_fallthru
          _
      $region28: #{tpu_custom_call.1} parent=5 // pred_fallthru
        _
      %p1133 = scmp.le.s32.totalorder 2, %s16
      // Predicated region
      $region37: #{tpu_custom_call.1} parent=5 // pred_check
        %p1134 = pneg %p1133
      $region38: #{tpu_custom_call.1} parent=5 // pred_check_branch
        %1136 = sbr.rel (%p1134) target = $region40
      $region39: #{tpu_custom_call.1} parent=5 // pred_region
        %s1137 = ssub.s32 %s16, 2
        // Predicated region
        $region41: #{tpu_custom_call.1} parent=39 // pred_check
          %p1138 = pneg %p92
        $region42: #{tpu_custom_call.1} parent=39 // pred_check_branch
          %1140 = sbr.rel (%p1138) target = $region44
        $region43: #{tpu_custom_call.1} parent=39 // pred_region
          %s1141 = sand.u32 %s77, 1
          %s1142 = scalar_lea.sflag [#allocation3], %s1141
          %s1143 = sand.u32 %s77, 1
          %s1144 = smul.addr %s1143, 256
          %s1145 = scalar_lea.vmem [#allocation2], %s1144
          %1147 = dma.done %s1142, 4096
        $region44: #{tpu_custom_call.1} parent=39 // pred_fallthru
          _
        // Predicated region
        $region45: #{tpu_custom_call.1} parent=39 // pred_check
          %p1148 = pneg %p118
        $region46: #{tpu_custom_call.1} parent=39 // pred_check_branch
          %1150 = sbr.rel (%p1148) target = $region48
        $region47: #{tpu_custom_call.1} parent=39 // pred_region
          %s1151 = sand.u32 %s103, 1
          %s1152 = scalar_lea.sflag [#allocation5], %s1151
          %s1153 = sand.u32 %s103, 1
          %s1154 = smul.addr %s1153, 2
          %s1155 = scalar_lea.vmem [#allocation4], %s1154
          %1157 = dma.done %s1152, 32
        $region48: #{tpu_custom_call.1} parent=39 // pred_fallthru
          _
      $region40: #{tpu_custom_call.1} parent=5 // pred_fallthru
        _
    $region6: #{tpu_custom_call.1} parent=1 // loop_footer
      %s20 = sadd.s32 1, %s16
    $region7: #{tpu_custom_call.1} parent=1 // loop_footer_branch
      %15 = sbr.rel target = $region3
    $region8: #{tpu_custom_call.1} parent=1 // loop_exit
      _
    %1158 = vsyncpa [#allocation3], 1
    %s1159 = scalar_lea.sflag [#allocation3], 1
    %1160 = vsyncpa %s1159, 1
    %1161 = vsyncpa [#allocation5], 1
    %s1162 = scalar_lea.sflag [#allocation5], 1
    %1163 = vsyncpa %s1162, 1

</llo_original>
